<compile_context>
chip_gen: v5e
topology: v5e:2x2
jax: 0.10.0
libtpu: 0.0.40
codegen_flags: <defaults>
</compile_context>

<pallas_src>
import jax
import jax.numpy as jnp
from jax.experimental import pallas as pl
from jax.experimental.pallas import tpu as pltpu

_N_PAD = 128          # lane-dense padded output width (columns 0..6 are real)
_SOFTPLUS_THRESH = 20.0


def _latent_predictor_kernel(h_ref, wt_ref, b_ref, out_ref):
    # Linear layer on the MXU: [TB, D] @ [D, 128] + [1, 128]
    h = h_ref[...]
    wt = wt_ref[...]
    z = jnp.dot(h, wt, preferred_element_type=jnp.float32) + b_ref[...]

    # Lane index for selecting which activation applies to which column.
    lane = jax.lax.broadcasted_iota(jnp.int32, z.shape, dimension=1)

    # sigmoid (EUP-friendly logistic form) for the z_pres column.
    sig = jax.nn.sigmoid(z)
    # softplus with torch's threshold=20 semantics for the z_where_sd columns.
    sp = jnp.where(z > _SOFTPLUS_THRESH, z,
                   jnp.log1p(jnp.exp(jnp.minimum(z, _SOFTPLUS_THRESH))))

    # lane 0 -> sigmoid, lanes 1..3 -> identity, lanes 4..6 -> softplus,
    # pad lanes 7..127 -> 0 (discarded by wrapper slices).
    out = jnp.where(lane == 0, sig,
          jnp.where(lane < 4, z,
          jnp.where(lane < 7, sp, 0.0)))
    out_ref[...] = out


def latent_predictor_forward(h, weight, bias, *, batch_tile=512):
    """h: [B, D] float32; weight: [7, D] (PyTorch layout); bias: [7]."""
    h = h.astype(jnp.float32)
    B, D = h.shape

    # Zero-pad params so z lands lane-aligned in one 128-lane vreg row.
    wt_pad = jnp.zeros((D, _N_PAD), jnp.float32).at[:, :7].set(
        weight.T.astype(jnp.float32))
    b_pad = jnp.zeros((1, _N_PAD), jnp.float32).at[:, :7].set(
        bias.astype(jnp.float32).reshape(1, 7))

    if B <= batch_tile:
        # Small batch: no grid, whole arrays resident in VMEM.
        out = pl.pallas_call(
            _latent_predictor_kernel,
            out_shape=jax.ShapeDtypeStruct((B, _N_PAD), jnp.float32),
            in_specs=[
                pl.BlockSpec(memory_space=pltpu.MemorySpace.VMEM),
                pl.BlockSpec(memory_space=pltpu.MemorySpace.VMEM),
                pl.BlockSpec(memory_space=pltpu.MemorySpace.VMEM),
            ],
            out_specs=pl.BlockSpec(memory_space=pltpu.MemorySpace.VMEM),
        )(h, wt_pad, b_pad)
    else:
        # Large batch: tile the batch axis; params stay VMEM-resident.
        tb = batch_tile
        n_tiles = pl.cdiv(B, tb)
        b_padded = n_tiles * tb
        h_p = h if b_padded == B else jnp.pad(h, ((0, b_padded - B), (0, 0)))
        out = pl.pallas_call(
            _latent_predictor_kernel,
            out_shape=jax.ShapeDtypeStruct((b_padded, _N_PAD), jnp.float32),
            grid=(n_tiles,),
            in_specs=[
                pl.BlockSpec((tb, D), lambda i: (i, 0)),
                pl.BlockSpec((D, _N_PAD), lambda i: (0, 0)),
                pl.BlockSpec((1, _N_PAD), lambda i: (0, 0)),
            ],
            out_specs=pl.BlockSpec((tb, _N_PAD), lambda i: (i, 0)),
            compiler_params=pltpu.CompilerParams(
                dimension_semantics=("parallel",)),
        )(h_p, wt_pad, b_pad)
        out = out[:B]

    # Split the fused lane-dense slab into the three module outputs (XLA side).
    z_pres_proba = out[:, 0:1]
    z_where_mu = out[:, 1:4]
    z_where_sd = out[:, 4:7]
    return z_pres_proba, z_where_mu, z_where_sd


def reference_forward(h, weight, bias):
    z = h @ weight.T + bias
    z_pres = jax.nn.sigmoid(z[:, 0:1])
    z_mu = z[:, 1:4]
    z_sd = jax.nn.softplus(z[:, 4:7])
    return z_pres, z_mu, z_sd


if __name__ == "__main__":
    D = 32         # input_size (hidden)

    key = jax.random.PRNGKey(0)
    k_h, k_w, k_b, k_h2 = jax.random.split(key, 4)

    # PyTorch-layout parameters: weight [out=7, in=D], bias [7].
    weight = jax.random.normal(k_w, (7, D), dtype=jnp.float32) * 0.1
    bias = jax.random.normal(k_b, (7,), dtype=jnp.float32) * 0.1

    # --- Small batch (no-grid path), as in the module's typical use ---------
    B = 2
    h = jax.random.normal(k_h, (B, D), dtype=jnp.float32)
    z_pres, z_mu, z_sd = latent_predictor_forward(h, weight, bias)
    jax.block_until_ready((z_pres, z_mu, z_sd))

    r_pres, r_mu, r_sd = reference_forward(h, weight, bias)
    assert z_pres.shape == (B, 1) and z_mu.shape == (B, 3) and z_sd.shape == (B, 3)
    assert jnp.allclose(z_pres, r_pres, atol=1e-5)
    assert jnp.allclose(z_mu, r_mu, atol=1e-5)
    assert jnp.allclose(z_sd, r_sd, atol=1e-5)

    # --- Larger batch (grid / batch-tiled path, exercises padding) ----------
    B2 = 1029
    h2 = jax.random.normal(k_h2, (B2, D), dtype=jnp.float32)
    z_pres2, z_mu2, z_sd2 = latent_predictor_forward(h2, weight, bias,
                                                     batch_tile=512)
    jax.block_until_ready((z_pres2, z_mu2, z_sd2))

    r_pres2, r_mu2, r_sd2 = reference_forward(h2, weight, bias)
    assert z_pres2.shape == (B2, 1) and z_mu2.shape == (B2, 3) and z_sd2.shape == (B2, 3)
    assert jnp.allclose(z_pres2, r_pres2, atol=1e-5)
    assert jnp.allclose(z_mu2, r_mu2, atol=1e-5)
    assert jnp.allclose(z_sd2, r_sd2, atol=1e-5)

    print("KERNEL_OK")
</pallas_src>

<mosaic_0001>
module attributes {stable_mosaic.version = 11 : i64} {
  func.func @_latent_predictor_kernel(%arg0: memref<2x32xf32, #tpu.memory_space<vmem>>, %arg1: memref<32x128xf32, #tpu.memory_space<vmem>>, %arg2: memref<1x128xf32, #tpu.memory_space<vmem>>, %arg3: memref<2x128xf32, #tpu.memory_space<vmem>>) attributes {dimension_semantics = [], scalar_prefetch = 0 : i64, scratch_operands = 0 : i64, tpu.core_type = #tpu.core_type<tc>} {
    %c0 = arith.constant 0 : index
    %c0_0 = arith.constant 0 : index
    %0 = vector.load %arg0[%c0, %c0_0] : memref<2x32xf32, #tpu.memory_space<vmem>>, vector<2x32xf32>
    %c0_1 = arith.constant 0 : index
    %c0_2 = arith.constant 0 : index
    %1 = vector.load %arg1[%c0_1, %c0_2] : memref<32x128xf32, #tpu.memory_space<vmem>>, vector<32x128xf32>
    %cst = arith.constant dense<0.000000e+00> : vector<2x128xf32>
    %2 = tpu.matmul %0, %1, %cst {dimension_numbers = #tpu.dot_dimension_numbers<[1], [0], [0], [1], [0, 0, 1, 1], [], []>} : vector<2x32xf32>, vector<32x128xf32>, vector<2x128xf32> -> vector<2x128xf32>
    %c0_3 = arith.constant 0 : index
    %c0_4 = arith.constant 0 : index
    %3 = vector.load %arg2[%c0_3, %c0_4] : memref<1x128xf32, #tpu.memory_space<vmem>>, vector<1x128xf32>
    %4 = vector.broadcast %3 : vector<1x128xf32> to vector<2x128xf32>
    %5 = arith.addf %2, %4 : vector<2x128xf32>
    %6 = tpu.iota {dimensions = array<i32: 1>} : vector<2x128xi32>
    %7 = arith.negf %5 : vector<2x128xf32>
    %8 = math.exp %7 : vector<2x128xf32>
    %cst_5 = arith.constant 1.000000e+00 : f32
    %9 = vector.broadcast %cst_5 : f32 to vector<2x128xf32>
    %10 = arith.addf %9, %8 : vector<2x128xf32>
    %11 = arith.divf %9, %10 : vector<2x128xf32>
    %cst_6 = arith.constant 2.000000e+01 : f32
    %12 = vector.broadcast %cst_6 : f32 to vector<2x128xf32>
    %13 = arith.cmpf ogt, %5, %12 : vector<2x128xf32>
    %cst_7 = arith.constant 2.000000e+01 : f32
    %14 = vector.broadcast %cst_7 : f32 to vector<2x128xf32>
    %15 = arith.minimumf %5, %14 : vector<2x128xf32>
    %16 = math.exp %15 : vector<2x128xf32>
    %17 = math.log1p %16 : vector<2x128xf32>
    %18 = arith.select %13, %5, %17 : vector<2x128xi1>, vector<2x128xf32>
    %c0_i32 = arith.constant 0 : i32
    %19 = vector.broadcast %c0_i32 : i32 to vector<2x128xi32>
    %20 = arith.cmpi eq, %6, %19 : vector<2x128xi32>
    %c4_i32 = arith.constant 4 : i32
    %21 = vector.broadcast %c4_i32 : i32 to vector<2x128xi32>
    %22 = arith.cmpi slt, %6, %21 : vector<2x128xi32>
    %c7_i32 = arith.constant 7 : i32
    %23 = vector.broadcast %c7_i32 : i32 to vector<2x128xi32>
    %24 = arith.cmpi slt, %6, %23 : vector<2x128xi32>
    %cst_8 = arith.constant 0.000000e+00 : f32
    %25 = vector.broadcast %cst_8 : f32 to vector<2x128xf32>
    %26 = arith.select %24, %18, %25 : vector<2x128xi1>, vector<2x128xf32>
    %27 = arith.select %22, %5, %26 : vector<2x128xi1>, vector<2x128xf32>
    %28 = arith.select %20, %11, %27 : vector<2x128xi1>, vector<2x128xf32>
    %c0_9 = arith.constant 0 : index
    %c0_10 = arith.constant 0 : index
    %29 = vector.load %arg3[%c0_9, %c0_10] : memref<2x128xf32, #tpu.memory_space<vmem>>, vector<2x128xf32>
    tpu.vector_store %arg3[%c0_9, %c0_10], %28 {strides = array<i32>} : memref<2x128xf32, #tpu.memory_space<vmem>>, vector<2x128xf32>,
    return
  }
}

</mosaic_0001>

<llo_original>
// kernel: tpu_custom_call.1
$region0: #{tpu_custom_call.1}
  #allocation0 [shape = 'u32[]', space=smem, size = 0x4, offset = 0x4, fixed_abs, tag = 'smem constant byte address 0x4 - core index']
  #allocation1 [shape = 'u32[72,128]{1,0:T(1,128)}', space=vmem, size = 0x9000, scoped, tag = 'internal scratch']
  %s0 = inlined_call_operand.hbm [shape: f32[2,32], index: 0, kind: input, shape index: {}]
  %s1 = inlined_call_operand.hbm [shape: f32[32,128], index: 1, kind: input, shape index: {}]
  %s2 = inlined_call_operand.vmem [shape: f32[1,128], index: 2, kind: input, shape index: {}]
  %s3 = inlined_call_operand.hbm [shape: f32[2,128], index: 3, kind: output, shape index: {}]
  %s4 = sld [smem:[#allocation0]]
  $region30: #{tpu_custom_call.1} parent=0
    _
  %s6 = ssub.s32 1, %s4
  %s7 = scalar_select 0, %s6, %s4
  $region1: #{tpu_custom_call.1} parent=0
    #allocation2 [shape = 'u8[1024]{0}', space=vmem, size = 0x400, scoped, tag = 'input window, operand 0, single buffered']
    #allocation3 [shape = 's32[1]{0}', space=sflag, size = 0x4, scoped, tag = 'scoped memory for tpu_custom_call.1']
    #allocation4 [shape = 's32[1]{0}', space=sflag, size = 0x4, scoped, tag = 'scoped memory for tpu_custom_call.1']
    #allocation5 [shape = 'u8[16384]{0}', space=vmem, size = 0x4000, scoped, tag = 'input window, operand 1, single buffered']
    #allocation6 [shape = 's32[1]{0}', space=sflag, size = 0x4, scoped, tag = 'scoped memory for tpu_custom_call.1']
    #allocation7 [shape = 'u8[1024]{0}', space=vmem, size = 0x400, scoped, tag = 'output window, operand 0, single buffered']
    %8 = vsyncpa [#allocation3], 0
    %9 = vsyncpa [#allocation6], 0
    %10 = vsyncpa [#allocation4], 0
    // Predicated region
    $region2: #{tpu_custom_call.1} parent=1 // pred_check
      _
    $region3: #{tpu_custom_call.1} parent=1 // pred_check_branch
      %12 = sbr.rel (0) target = $region5
    $region4: #{tpu_custom_call.1} parent=1 // pred_region
      %14 = vsyncadd [#allocation3], 0
      %s16 = sshll.u32 %s0, 4
      %s17 = int_to_ptr.hbm [resolvable:$true] %s16
      %s18 = sshll.u32 [#allocation2], 4
      %s19 = int_to_ptr.vmem [resolvable:$true] %s18
      %21 = dma.hbm_to_vmem [thread:$0]  %s17, 32, %s19, [#allocation3]
    $region5: #{tpu_custom_call.1} parent=1 // pred_fallthru
      _
    // Predicated region
    $region6: #{tpu_custom_call.1} parent=1 // pred_check
      _
    $region7: #{tpu_custom_call.1} parent=1 // pred_check_branch
      %23 = sbr.rel (0) target = $region9
    $region8: #{tpu_custom_call.1} parent=1 // pred_region
      %25 = vsyncadd [#allocation6], 0
      %s26 = sshll.u32 %s1, 4
      %s27 = int_to_ptr.hbm [resolvable:$true] %s26
      %s28 = sshll.u32 [#allocation5], 4
      %s29 = int_to_ptr.vmem [resolvable:$true] %s28
      %34 = dma.hbm_to_vmem [thread:$0]  %s27, 512, %s29, [#allocation6], 128, 128, 8
    $region9: #{tpu_custom_call.1} parent=1 // pred_fallthru
      _
    // Predicated region
    $region10: #{tpu_custom_call.1} parent=1 // pred_check
      _
    $region11: #{tpu_custom_call.1} parent=1 // pred_check_branch
      %36 = sbr.rel (0) target = $region13
    $region12: #{tpu_custom_call.1} parent=1 // pred_region
      _
    $region13: #{tpu_custom_call.1} parent=1 // pred_fallthru
      _
    // Predicated region
    $region14: #{tpu_custom_call.1} parent=1 // pred_check
      _
    $region15: #{tpu_custom_call.1} parent=1 // pred_check_branch
      %38 = sbr.rel (0) target = $region17
    $region16: #{tpu_custom_call.1} parent=1 // pred_region
      %40 = dma.done [#allocation3], 32
    $region17: #{tpu_custom_call.1} parent=1 // pred_fallthru
      _
    // Predicated region
    $region18: #{tpu_custom_call.1} parent=1 // pred_check
      _
    $region19: #{tpu_custom_call.1} parent=1 // pred_check_branch
      %42 = sbr.rel (0) target = $region21
    $region20: #{tpu_custom_call.1} parent=1 // pred_region
      %44 = dma.done [#allocation6], 512
    $region21: #{tpu_custom_call.1} parent=1 // pred_fallthru
      _
    %v45 = vld [vmem:[#allocation2] sm:$0x3]
    %v46 = vld [vmem:[#allocation5] sm:$0xff]
    %v47 = vld [vmem:[#allocation5 + $0x8] sm:$0xff]
    %v48 = vld [vmem:[#allocation5 + $0x10] sm:$0xff]
    %v49 = vld [vmem:[#allocation5 + $0x18] sm:$0xff]
    %v50 = vld [vmem:[%s2] sm:$0x1]
    %v52 = vperm.slane %v50, 0
    %vm54 = vcmask 261120
    %v56 = vsel %vm54, %v45, 0
    %58 = vmatpush.msra.mxu0 0.0
    %59 = vmatpush.msra.mxu0 0.0
    %60 = vmatpush.msra.mxu0 0.0
    %61 = vmatpush.msra.mxu0 0.0
    %62 = vmatpush.msra.mxu0 0.0
    %63 = vmatpush.msra.mxu0 0.0
    %64 = vmatpush.msra.mxu0 0.0
    %65 = vmatpush.msra.mxu0 0.0
    %66 = vmatpush.msra.mxu0 0.0
    %67 = vmatpush.msra.mxu0 0.0
    %68 = vmatpush.msra.mxu0 0.0
    %69 = vmatpush.msra.mxu0 0.0
    %70 = vmatpush.msra.mxu0 %v49
    %71 = vmatpush.msra.mxu0 %v48
    %72 = vmatpush.msra.mxu0 %v47
    %73 = vmatpush.msra.mxu0 %v46
    %74 = vmatmul.f32.gmra.mxu0 %v56
    %v75 = vpop.f32.mrf.mxu0
    %v76 = vadd.f32 %v52, %v75
    %77 = vdwg.mxu0
    %v78 = vlaneseq
    %v79 = vand.u32 %v78, 127
    %v80 = vxor.u32 %v76, 2147483648
    %v81 = vmul.f32 %v80, 1.442695
    %v82 = vpow.pop %v81
    %v83 = vadd.f32 %v82, 1.0
    %v84 = vrcp.pop %v83
    %v85 = vmul.f32 %v83, %v84
    %v86 = vsub.f32 1.0, %v85
    %v87 = vmul.f32 %v84, %v86
    %v88 = vadd.f32 %v84, %v87
    %vm89 = vweird.f32 %v83
    %vm90 = vweird.f32 %v84
    %vm91 = vmor %vm89, %vm90
    %v92 = vsel %vm91, %v84, %v88
    %v93 = vand.u32 2147483647, %v83
    %vm94 = vcmp.eq.f32.partialorder %v93, 8.507059e+37
    %v95 = vand.u32 %v83, 2147483648
    %v96 = vor.u32 1.1754944e-38, %v95
    %v97 = vsel %vm94, %v96, %v92
    %v98 = vmul.f32 1.0, %v97
    %vm99 = vcmp.gt.f32.partialorder %v76, 20.0
    %v100 = vmin.f32 %v76, 20.0
    %v101 = vmul.f32 %v100, 1.442695
    %v102 = vpow.pop %v101
    %v103 = vadd.f32 %v102, 1.0
    %v104 = vlog2.pop %v103
    %v105 = vmul.f32 %v104, 0.6931472
    %v106 = vmul.f32 -0.5, %v102
    %v107 = vadd.f32 %v106, 1.0
    %v108 = vmul.f32 %v107, %v102
    %v109 = vand.u32 2147483647, %v102
    %vm110 = vcmp.lt.f32.partialorder %v109, 0.0004427343
    %v111 = vsel %vm110, %v108, %v105
    %v112 = vsel %vm99, %v76, %v111
    %vm113 = vcmp.eq.s32.totalorder %v79, 0
    %vm114 = vcmp.lt.s32.totalorder %v79, 4
    %vm115 = vcmp.lt.s32.totalorder %v79, 7
    %v116 = vsel %vm115, %v112, 0.0
    %v117 = vsel %vm114, %v76, %v116
    %v118 = vsel %vm113, %v98, %v117
    %119 = vst [vmem:[#allocation7] sm:$0x3] %v118
    // Predicated region
    $region22: #{tpu_custom_call.1} parent=1 // pred_check
      _
    $region23: #{tpu_custom_call.1} parent=1 // pred_check_branch
      %121 = sbr.rel (0) target = $region25
    $region24: #{tpu_custom_call.1} parent=1 // pred_region
      %123 = vsyncadd [#allocation4], 0
      %s125 = sshll.u32 [#allocation7], 4
      %s126 = int_to_ptr.vmem [resolvable:$true] %s125
      %s127 = sshll.u32 %s3, 4
      %s128 = int_to_ptr.hbm [resolvable:$true] %s127
      %130 = dma.vmem_to_hbm [thread:$0]  %s126, 32, %s128, [#allocation4]
    $region25: #{tpu_custom_call.1} parent=1 // pred_fallthru
      _
    // Predicated region
    $region26: #{tpu_custom_call.1} parent=1 // pred_check
      _
    $region27: #{tpu_custom_call.1} parent=1 // pred_check_branch
      %132 = sbr.rel (0) target = $region29
    $region28: #{tpu_custom_call.1} parent=1 // pred_region
      %134 = dma.done [#allocation4], 32
    $region29: #{tpu_custom_call.1} parent=1 // pred_fallthru
      _
    %135 = vsyncpa [#allocation3], 1
    %136 = vsyncpa [#allocation6], 1
    %137 = vsyncpa [#allocation4], 1

</llo_original>
